<compile_context>
chip_gen: v7x
topology: tpu7x:2x2x1
jax: 0.10.0
libtpu: 0.0.40
codegen_flags: <defaults>
</compile_context>

<pallas_src>
import functools

import jax
import jax.numpy as jnp
from jax.experimental import pallas as pl
from jax.experimental.pallas import tpu as pltpu

LANE = 128
SUBLANE = 8


def _round_up(x, m):
    return (x + m - 1) // m * m


def _vmem_capacity_bytes():
    """Per-core VMEM capacity; falls back to the smallest current chip (v7x, 64 MiB)."""
    try:
        return int(pltpu.get_tpu_info().vmem_capacity_bytes)
    except Exception:
        return 64 << 20


def prepare_vib_params(w_mu, b_mu, w_lv, b_lv):
    """Fuse + lane-pad the two Linear layers ONCE at parameter-init time.

    Weights are stored transposed vs PyTorch: w_*: [D, K], b_*: [K].
    Returns (w_cat [D, 2*Kp], b_cat [1, 2*Kp]) with Kp = round_up(K, 128).
    Padded columns are zero (inert in the matmul); padding makes the in-kernel
    mu / log_var split lane-tile aligned.
    """
    D, K = w_mu.shape
    Kp = _round_up(K, LANE)
    pad = Kp - K
    if pad:
        w_mu = jnp.pad(w_mu, ((0, 0), (0, pad)))
        w_lv = jnp.pad(w_lv, ((0, 0), (0, pad)))
        b_mu = jnp.pad(b_mu, ((0, pad),))
        b_lv = jnp.pad(b_lv, ((0, pad),))
    w_cat = jnp.concatenate([w_mu, w_lv], axis=1)                 # [D, 2*Kp]
    b_cat = jnp.concatenate([b_mu, b_lv]).reshape(1, 2 * Kp)      # [1, 2*Kp]
    return w_cat, b_cat


def _epilogue(ml, eps, K, Kp, z_ref, mu_ref, lv_ref):
    # Both slices start at lane-tile-aligned offsets (0 and Kp): no cross-lane
    # shuffles. Sub-128 widths (small K) only cost a masked store.
    mu = ml[:, :K]
    lv = ml[:, Kp:Kp + K]
    std = jnp.exp(0.5 * lv)                                       # EUP
    z = mu + eps.astype(jnp.float32) * std
    z_ref[...] = z.astype(z_ref.dtype)
    mu_ref[...] = mu.astype(mu_ref.dtype)
    lv_ref[...] = lv.astype(lv_ref.dtype)


def _vib_kernel_single(x_ref, w_ref, b_ref, eps_ref, z_ref, mu_ref, lv_ref,
                       *, K, Kp):
    ml = jnp.dot(x_ref[...], w_ref[...], preferred_element_type=jnp.float32)
    ml = ml + b_ref[...].astype(jnp.float32)
    _epilogue(ml, eps_ref[...], K, Kp, z_ref, mu_ref, lv_ref)


def _vib_kernel_streamk(x_ref, w_ref, b_ref, eps_ref, z_ref, mu_ref, lv_ref,
                        acc_ref, *, K, Kp):
    k = pl.program_id(1)

    @pl.when(k == 0)
    def _():
        acc_ref[...] = jnp.zeros_like(acc_ref)

    acc_ref[...] += jnp.dot(x_ref[...], w_ref[...],
                            preferred_element_type=jnp.float32)

    @pl.when(k == pl.num_programs(1) - 1)
    def _():
        ml = acc_ref[...] + b_ref[...].astype(jnp.float32)
        _epilogue(ml, eps_ref[...], K, Kp, z_ref, mu_ref, lv_ref)


def _pick_tiles(B, D, K, Kp, in_itemsize, out_itemsize):
    vmem_cap = _vmem_capacity_bytes()
    budget = int(vmem_cap * 0.4)          # headroom for compiler scratch etc.
    twoKp = 2 * Kp
    sub = max(SUBLANE, 32 // in_itemsize)  # sublane packing: 8 f32 / 16 bf16

    # --- contraction tile: stream the fused weight if it won't fit whole ---
    def w_db(t):                           # double-buffered weight-tile bytes
        return 2 * t * twoKp * in_itemsize

    if w_db(D) <= budget // 2 or D % LANE != 0:
        # TODO(synk): pad D to a 128-multiple to enable streaming for ragged D.
        tk = D
    else:
        cands = [d for d in range(LANE, D, LANE) if D % d == 0]
        fitting = [d for d in cands if w_db(d) <= budget // 2]
        tk = max(fitting) if fitting else (min(cands) if cands else D)

    # --- batch tile ---
    fixed = 2 * (tk * twoKp + twoKp) * in_itemsize
    per_row = (2 * tk * in_itemsize                 # x tile (double-buffered)
               + 2 * K * in_itemsize                # eps tile
               + 2 * 3 * K * out_itemsize           # z / mu / log_var tiles
               + (twoKp * 4 if tk != D else 0))     # f32 accumulator scratch
    if B <= sub:
        bm = B
    else:
        remaining = max(budget - fixed, per_row * sub)
        bm = min(B, remaining // per_row)
        # Keep >=2 batch tiles so the 'parallel' axis can shard across both
        # TensorCores on v7x; one extra grid step (~0.35us) is noise elsewhere.
        bm = min(bm, _round_up(pl.cdiv(B, 2), sub))
        bm = max(sub, (bm // sub) * sub)
    return bm, tk


def vib_forward(x, w_cat, b_cat, eps, K, *, bm=None, tk=None):
    """VIB forward: returns (z, mu, log_var), each [B, K].

    x: [B, D]; (w_cat, b_cat) from prepare_vib_params(); eps ~ N(0,1): [B, K]
    (the torch.randn_like(std) equivalent, passed in for reproducibility).
    """
    B, D = x.shape
    twoKp = w_cat.shape[1]
    Kp = twoKp // 2
    assert w_cat.shape == (D, twoKp) and b_cat.shape == (1, twoKp)
    assert eps.shape == (B, K) and K <= Kp

    out_dtype = x.dtype
    in_itemsize = jnp.dtype(x.dtype).itemsize
    out_itemsize = jnp.dtype(out_dtype).itemsize

    auto_bm, auto_tk = _pick_tiles(B, D, K, Kp, in_itemsize, out_itemsize)
    bm = auto_bm if bm is None else bm
    tk = auto_tk if tk is None else tk

    nb = pl.cdiv(B, bm)
    nk = pl.cdiv(D, tk)

    out_shape = tuple(jax.ShapeDtypeStruct((B, K), out_dtype) for _ in range(3))

    if nk == 1:
        kernel = functools.partial(_vib_kernel_single, K=K, Kp=Kp)
        grid = (nb,)
        in_specs = [
            pl.BlockSpec((bm, D), lambda i: (i, 0)),
            pl.BlockSpec((D, twoKp), lambda i: (0, 0)),
            pl.BlockSpec((1, twoKp), lambda i: (0, 0)),
            pl.BlockSpec((bm, K), lambda i: (i, 0)),
        ]
        out_specs = [pl.BlockSpec((bm, K), lambda i: (i, 0))] * 3
        scratch_shapes = ()
        dims = ("parallel",)
    else:
        kernel = functools.partial(_vib_kernel_streamk, K=K, Kp=Kp)
        grid = (nb, nk)
        in_specs = [
            pl.BlockSpec((bm, tk), lambda i, k: (i, k)),
            pl.BlockSpec((tk, twoKp), lambda i, k: (k, 0)),
            pl.BlockSpec((1, twoKp), lambda i, k: (0, 0)),
            pl.BlockSpec((bm, K), lambda i, k: (i, 0)),
        ]
        out_specs = [pl.BlockSpec((bm, K), lambda i, k: (i, 0))] * 3
        scratch_shapes = (pltpu.VMEM((bm, twoKp), jnp.float32),)
        dims = ("parallel", "arbitrary")

    footprint = (2 * (bm * tk + tk * twoKp + twoKp + bm * K) * in_itemsize
                 + 2 * 3 * bm * K * out_itemsize
                 + (bm * twoKp * 4 if nk > 1 else 0))
    vmem_cap = _vmem_capacity_bytes()
    vmem_limit = int(min(0.9 * vmem_cap, max(footprint + (4 << 20), 32 << 20)))

    cost = pl.CostEstimate(
        flops=2 * B * D * twoKp + 4 * B * K,
        transcendentals=B * K,
        bytes_accessed=(in_itemsize * (B * D + D * twoKp + twoKp + B * K)
                        + out_itemsize * 3 * B * K),
    )

    return pl.pallas_call(
        kernel,
        out_shape=out_shape,
        grid_spec=pltpu.PrefetchScalarGridSpec(
            num_scalar_prefetch=0,
            grid=grid,
            in_specs=in_specs,
            out_specs=out_specs,
            scratch_shapes=scratch_shapes,
        ),
        compiler_params=pltpu.CompilerParams(
            dimension_semantics=dims,
            vmem_limit_bytes=vmem_limit,
        ),
        cost_estimate=cost,
    )(x, w_cat, b_cat, eps)


if __name__ == "__main__":
    # Small shapes consistent with the module's forward:
    #   x: [batch, input_dim] -> bottleneck_dim outputs.
    batch, input_dim, bottleneck_dim = 16, 32, 16

    key = jax.random.PRNGKey(0)
    kx, kwm, kbm, kwl, kbl, keps = jax.random.split(key, 6)

    x = jax.random.normal(kx, (batch, input_dim), dtype=jnp.float32)

    # Deterministic parameter init (PyTorch Linear: weight [out, in], bias [out]).
    # Weights are stored transposed as [in, out] for the kernel's x @ W layout.
    bound = 1.0 / (input_dim ** 0.5)
    w_mu = jax.random.uniform(kwm, (input_dim, bottleneck_dim),
                              minval=-bound, maxval=bound, dtype=jnp.float32)
    b_mu = jax.random.uniform(kbm, (bottleneck_dim,),
                              minval=-bound, maxval=bound, dtype=jnp.float32)
    w_lv = jax.random.uniform(kwl, (input_dim, bottleneck_dim),
                              minval=-bound, maxval=bound, dtype=jnp.float32)
    b_lv = jax.random.uniform(kbl, (bottleneck_dim,),
                              minval=-bound, maxval=bound, dtype=jnp.float32)

    # Fuse + pad ONCE at "parameter init" time (not per forward call).
    w_cat, b_cat = prepare_vib_params(w_mu, b_mu, w_lv, b_lv)

    # eps ~ N(0,1), same role as torch.randn_like(std); deterministic here.
    eps = jax.random.normal(keps, (batch, bottleneck_dim), dtype=jnp.float32)

    fwd = jax.jit(functools.partial(vib_forward, K=bottleneck_dim))
    z, mu, log_var = fwd(x, w_cat, b_cat, eps)
    jax.block_until_ready((z, mu, log_var))

    # Pure-JAX reference check.
    mu_ref = x @ w_mu + b_mu
    lv_ref = x @ w_lv + b_lv
    z_ref = mu_ref + eps * jnp.exp(0.5 * lv_ref)
    assert z.shape == mu.shape == log_var.shape == (batch, bottleneck_dim)
    assert jnp.allclose(mu, mu_ref, atol=1e-4)
    assert jnp.allclose(log_var, lv_ref, atol=1e-4)
    assert jnp.allclose(z, z_ref, atol=1e-4)

    print("KERNEL_OK")
</pallas_src>

<mosaic_0001>
module attributes {stable_mosaic.version = 11 : i64} {
  func.func @_vib_kernel_single(%arg0: i32, %arg1: memref<8x32xf32, #tpu.memory_space<vmem>>, %arg2: memref<32x256xf32, #tpu.memory_space<vmem>>, %arg3: memref<1x256xf32, #tpu.memory_space<vmem>>, %arg4: memref<8x16xf32, #tpu.memory_space<vmem>>, %arg5: memref<8x16xf32, #tpu.memory_space<vmem>>, %arg6: memref<8x16xf32, #tpu.memory_space<vmem>>, %arg7: memref<8x16xf32, #tpu.memory_space<vmem>>) attributes {dimension_semantics = [#tpu.dimension_semantics<parallel>], iteration_bounds = array<i64: 2>, scalar_prefetch = 0 : i64, scratch_operands = 0 : i64, tpu.core_type = #tpu.core_type<tc>, window_params = [{transform_indices = @transform_0, window_bounds = array<i64: 8, 32>}, {pipeline_mode = #tpu.pipeline_mode<synchronous>, transform_indices = @transform_1, window_bounds = array<i64: 32, 256>}, {pipeline_mode = #tpu.pipeline_mode<synchronous>, transform_indices = @transform_2, window_bounds = array<i64: 1, 256>}, {transform_indices = @transform_3, window_bounds = array<i64: 8, 16>}, {transform_indices = @transform_4, window_bounds = array<i64: 8, 16>}, {transform_indices = @transform_5, window_bounds = array<i64: 8, 16>}, {transform_indices = @transform_6, window_bounds = array<i64: 8, 16>}]} {
    %c0 = arith.constant 0 : index
    %c0_0 = arith.constant 0 : index
    %0 = vector.load %arg1[%c0, %c0_0] : memref<8x32xf32, #tpu.memory_space<vmem>>, vector<8x32xf32>
    %c0_1 = arith.constant 0 : index
    %c0_2 = arith.constant 0 : index
    %1 = vector.load %arg2[%c0_1, %c0_2] : memref<32x256xf32, #tpu.memory_space<vmem>>, vector<32x256xf32>
    %cst = arith.constant dense<0.000000e+00> : vector<8x256xf32>
    %2 = tpu.matmul %0, %1, %cst {dimension_numbers = #tpu.dot_dimension_numbers<[1], [0], [0], [1], [0, 0, 1, 1], [], []>} : vector<8x32xf32>, vector<32x256xf32>, vector<8x256xf32> -> vector<8x256xf32>
    %c0_3 = arith.constant 0 : index
    %c0_4 = arith.constant 0 : index
    %3 = vector.load %arg3[%c0_3, %c0_4] : memref<1x256xf32, #tpu.memory_space<vmem>>, vector<1x256xf32>
    %4 = vector.broadcast %3 : vector<1x256xf32> to vector<8x256xf32>
    %5 = arith.addf %2, %4 : vector<8x256xf32>
    %c0_5 = arith.constant 0 : index
    %c0_6 = arith.constant 0 : index
    %6 = vector.load %arg4[%c0_5, %c0_6] : memref<8x16xf32, #tpu.memory_space<vmem>>, vector<8x16xf32>
    %7 = vector.extract_strided_slice %5 {offsets = [0, 0], sizes = [8, 16], strides = [1, 1]} : vector<8x256xf32> to vector<8x16xf32>
    %8 = vector.extract_strided_slice %5 {offsets = [0, 128], sizes = [8, 16], strides = [1, 1]} : vector<8x256xf32> to vector<8x16xf32>
    %cst_7 = arith.constant 5.000000e-01 : f32
    %9 = vector.broadcast %cst_7 : f32 to vector<8x16xf32>
    %10 = arith.mulf %9, %8 : vector<8x16xf32>
    %11 = math.exp %10 : vector<8x16xf32>
    %12 = arith.mulf %6, %11 : vector<8x16xf32>
    %13 = arith.addf %7, %12 : vector<8x16xf32>
    %c0_8 = arith.constant 0 : index
    %c0_9 = arith.constant 0 : index
    %14 = vector.load %arg5[%c0_8, %c0_9] : memref<8x16xf32, #tpu.memory_space<vmem>>, vector<8x16xf32>
    tpu.vector_store %arg5[%c0_8, %c0_9], %13 {strides = array<i32>} : memref<8x16xf32, #tpu.memory_space<vmem>>, vector<8x16xf32>,
    %c0_10 = arith.constant 0 : index
    %c0_11 = arith.constant 0 : index
    %15 = vector.load %arg6[%c0_10, %c0_11] : memref<8x16xf32, #tpu.memory_space<vmem>>, vector<8x16xf32>
    tpu.vector_store %arg6[%c0_10, %c0_11], %7 {strides = array<i32>} : memref<8x16xf32, #tpu.memory_space<vmem>>, vector<8x16xf32>,
    %c0_12 = arith.constant 0 : index
    %c0_13 = arith.constant 0 : index
    %16 = vector.load %arg7[%c0_12, %c0_13] : memref<8x16xf32, #tpu.memory_space<vmem>>, vector<8x16xf32>
    tpu.vector_store %arg7[%c0_12, %c0_13], %8 {strides = array<i32>} : memref<8x16xf32, #tpu.memory_space<vmem>>, vector<8x16xf32>,
    return
  }
  func.func @transform_0(%arg0: i32) -> (i32, i32) {
    %c0_i32 = arith.constant 0 : i32
    %c0_i32_0 = arith.constant 0 : i32
    return %arg0, %c0_i32 : i32, i32
  }
  func.func @transform_1(%arg0: i32) -> (i32, i32) {
    %c0_i32 = arith.constant 0 : i32
    %c0_i32_0 = arith.constant 0 : i32
    %c0_i32_1 = arith.constant 0 : i32
    return %c0_i32, %c0_i32_0 : i32, i32
  }
  func.func @transform_2(%arg0: i32) -> (i32, i32) {
    %c0_i32 = arith.constant 0 : i32
    %c0_i32_0 = arith.constant 0 : i32
    %c0_i32_1 = arith.constant 0 : i32
    return %c0_i32, %c0_i32_0 : i32, i32
  }
  func.func @transform_3(%arg0: i32) -> (i32, i32) {
    %c0_i32 = arith.constant 0 : i32
    %c0_i32_0 = arith.constant 0 : i32
    return %arg0, %c0_i32 : i32, i32
  }
  func.func @transform_4(%arg0: i32) -> (i32, i32) {
    %c0_i32 = arith.constant 0 : i32
    %c0_i32_0 = arith.constant 0 : i32
    return %arg0, %c0_i32 : i32, i32
  }
  func.func @transform_5(%arg0: i32) -> (i32, i32) {
    %c0_i32 = arith.constant 0 : i32
    %c0_i32_0 = arith.constant 0 : i32
    return %arg0, %c0_i32 : i32, i32
  }
  func.func @transform_6(%arg0: i32) -> (i32, i32) {
    %c0_i32 = arith.constant 0 : i32
    %c0_i32_0 = arith.constant 0 : i32
    return %arg0, %c0_i32 : i32, i32
  }
}

</mosaic_0001>

<llo_original>
// kernel: vib_forward.1
$region0: #{vib_forward.1}
  #allocation0 [shape = 'u32[]', space=smem, size = 0x4, offset = 0x4, fixed_abs, tag = 'smem constant byte address 0x4 - core index']
  #allocation1 [shape = 'u32[144,128]{1,0:T(1,128)}', space=vmem, size = 0x12000, scoped, tag = 'internal scratch']
  %s0 = inlined_call_operand.hbm [shape: f32[16,32], index: 0, kind: input, shape index: {}]
  %s1 = inlined_call_operand.hbm [shape: f32[32,256], index: 1, kind: input, shape index: {}]
  %s2 = inlined_call_operand.vmem [shape: f32[1,256], index: 2, kind: input, shape index: {}]
  %s3 = inlined_call_operand.hbm [shape: f32[16,16], index: 3, kind: input, shape index: {}]
  %s4 = inlined_call_operand.hbm [shape: f32[16,16], index: 4, kind: output, shape index: {0}]
  %s5 = inlined_call_operand.hbm [shape: f32[16,16], index: 5, kind: output, shape index: {1}]
  %s6 = inlined_call_operand.hbm [shape: f32[16,16], index: 6, kind: output, shape index: {2}]
  %7 = xla_tuple %s4, %s5, %s6
  %s8 = sld [smem:[#allocation0]]
  $region77: #{vib_forward.1} parent=0
    _
  %s10 = ssub.s32 1, %s8
  %s11 = scalar_select 0, %s10, %s8
  $region1: #{vib_forward.1} parent=0
    #allocation2 [shape = 'u8[8192]{0}', space=vmem, size = 0x2000, scoped, tag = 'input window, operand 0']
    #allocation3 [shape = 's32[2]{0}', space=sflag, size = 0x8, scoped, tag = 'scoped memory for vib_forward.1']
    #allocation4 [shape = 's32[2]{0}', space=sflag, size = 0x8, scoped, tag = 'scoped memory for vib_forward.1']
    #allocation5 [shape = 'u8[32768]{0}', space=vmem, size = 0x8000, scoped, tag = 'input window, operand 1, single buffered']
    #allocation6 [shape = 's32[1]{0}', space=sflag, size = 0x4, scoped, tag = 'scoped memory for vib_forward.1']
    #allocation7 [shape = 'u8[8192]{0}', space=vmem, size = 0x2000, scoped, tag = 'input window, operand 3']
    #allocation8 [shape = 'u8[8192]{0}', space=vmem, size = 0x2000, scoped, tag = 'output window, operand 0']
    #allocation9 [shape = 'u8[8192]{0}', space=vmem, size = 0x2000, scoped, tag = 'output window, operand 1']
    #allocation10 [shape = 's32[2]{0}', space=sflag, size = 0x8, scoped, tag = 'scoped memory for vib_forward.1']
    #allocation11 [shape = 'u8[8192]{0}', space=vmem, size = 0x2000, scoped, tag = 'output window, operand 2']
    %12 = vsyncpa [#allocation3], 0
    %s13 = scalar_lea.sflag [#allocation3], 1
    %14 = vsyncpa %s13, 0
    %15 = vsyncpa [#allocation6], 0
    %16 = vsyncpa [#allocation4], 0
    %s17 = scalar_lea.sflag [#allocation4], 1
    %18 = vsyncpa %s17, 0
    %19 = vsyncpa [#allocation10], 0
    %s20 = scalar_lea.sflag [#allocation10], 1
    %21 = vsyncpa %s20, 0
    loop: start=0, step=1, limit=4
    $region2: #{vib_forward.1} parent=1 // loop_pre_header
      _
    $region3: #{vib_forward.1} parent=1 // loop_header
      %s23 = sphi 0, %s27
      %p24 = scmp.ge.s32.totalorder %s23, 4
      %s33 = sphi 0, %s35
      %s36 = sphi 0, %s33
      %s37 = sphi 0, %s36
      %s53 = sphi 0, %s37
      %s57 = sphi 0, %s57
      %s59 = sphi 0, %s57
      %s60 = sphi 0, %s59
      %s74 = sphi 0, %s60
      %s78 = sphi 0, %s78
      %s80 = sphi 0, %s78
      %s81 = sphi 0, %s80
      %s95 = sphi 0, %s81
      %s101 = sphi 0, %s103
      %s104 = sphi 0, %s101
      %s105 = sphi 0, %s104
      %s121 = sphi 0, %s105
      %s127 = sphi 0, %s129
      %s130 = sphi 0, %s127
      %s131 = sphi 0, %s130
      %s147 = sphi 0, %s131
      %s153 = sphi 0, %s155
      %s156 = sphi 0, %s153
      %s157 = sphi 0, %s156
      %s173 = sphi 0, %s157
      %s179 = sphi 0, %s181
      %s182 = sphi 0, %s179
      %s183 = sphi 0, %s182
      %s199 = sphi 0, %s183
    $region4: #{vib_forward.1} parent=1 // loop_header_branch
      %26 = sbr.rel (%p24) target = $region8
    $region5: #{vib_forward.1} parent=1 // loop_body
      %s28 = ssub.s32 %s23, 1
      %s29 = ssub.s32 %s23, 2
      %s30 = sadd.s32 %s23, 1
      %s31 = ssub.s32 %s23, %s30
      %p32 = scmp.eq.s32.totalorder %s31, 0
      %s34 = sadd.s32 %s33, 1
      %s35 = scalar_select %p32, %s33, %s34
      %p38 = pneg %p32
      %p39 = scmp.eq.s32.totalorder %s23, 1
      %p40 = por %p38, %p39
      %p41 = scmp.ne.s32.totalorder %s33, %s36
      %p42 = scmp.eq.s32.totalorder %s23, 0
      %p43 = por %p41, %p42
      %p44 = scmp.ne.s32.totalorder %s33, %s36
      %p45 = scmp.eq.s32.totalorder %s28, 1
      %p46 = por %p44, %p45
      %p47 = scmp.ne.s32.totalorder %s36, %s37
      %p48 = scmp.eq.s32.totalorder %s28, 0
      %p49 = por %p47, %p48
      %p50 = scmp.ne.s32.totalorder %s36, %s37
      %p51 = scmp.eq.s32.totalorder %s29, 1
      %p52 = por %p50, %p51
      %p54 = scmp.ne.s32.totalorder %s37, %s53
      %p55 = scmp.eq.s32.totalorder %s29, 0
      %p56 = por %p54, %p55
      %s58 = sadd.s32 %s57, 1
      %p61 = scmp.eq.s32.totalorder %s23, 1
      %p62 = scmp.ne.s32.totalorder %s57, %s59
      %p63 = scmp.eq.s32.totalorder %s23, 0
      %p64 = por %p62, %p63
      %p65 = scmp.ne.s32.totalorder %s57, %s59
      %p66 = scmp.eq.s32.totalorder %s28, 1
      %p67 = por %p65, %p66
      %p68 = scmp.ne.s32.totalorder %s59, %s60
      %p69 = scmp.eq.s32.totalorder %s28, 0
      %p70 = por %p68, %p69
      %p71 = scmp.ne.s32.totalorder %s59, %s60
      %p72 = scmp.eq.s32.totalorder %s29, 1
      %p73 = por %p71, %p72
      %p75 = scmp.ne.s32.totalorder %s60, %s74
      %p76 = scmp.eq.s32.totalorder %s29, 0
      %p77 = por %p75, %p76
      %s79 = sadd.s32 %s78, 1
      %p82 = scmp.eq.s32.totalorder %s23, 1
      %p83 = scmp.ne.s32.totalorder %s78, %s80
      %p84 = scmp.eq.s32.totalorder %s23, 0
      %p85 = por %p83, %p84
      %p86 = scmp.ne.s32.totalorder %s78, %s80
      %p87 = scmp.eq.s32.totalorder %s28, 1
      %p88 = por %p86, %p87
      %p89 = scmp.ne.s32.totalorder %s80, %s81
      %p90 = scmp.eq.s32.totalorder %s28, 0
      %p91 = por %p89, %p90
      %p92 = scmp.ne.s32.totalorder %s80, %s81
      %p93 = scmp.eq.s32.totalorder %s29, 1
      %p94 = por %p92, %p93
      %p96 = scmp.ne.s32.totalorder %s81, %s95
      %p97 = scmp.eq.s32.totalorder %s29, 0
      %p98 = por %p96, %p97
      %s99 = ssub.s32 %s23, %s30
      %p100 = scmp.eq.s32.totalorder %s99, 0
      %s102 = sadd.s32 %s101, 1
      %s103 = scalar_select %p100, %s101, %s102
      %p106 = pneg %p100
      %p107 = scmp.eq.s32.totalorder %s23, 1
      %p108 = por %p106, %p107
      %p109 = scmp.ne.s32.totalorder %s101, %s104
      %p110 = scmp.eq.s32.totalorder %s23, 0
      %p111 = por %p109, %p110
      %p112 = scmp.ne.s32.totalorder %s101, %s104
      %p113 = scmp.eq.s32.totalorder %s28, 1
      %p114 = por %p112, %p113
      %p115 = scmp.ne.s32.totalorder %s104, %s105
      %p116 = scmp.eq.s32.totalorder %s28, 0
      %p117 = por %p115, %p116
      %p118 = scmp.ne.s32.totalorder %s104, %s105
      %p119 = scmp.eq.s32.totalorder %s29, 1
      %p120 = por %p118, %p119
      %p122 = scmp.ne.s32.totalorder %s105, %s121
      %p123 = scmp.eq.s32.totalorder %s29, 0
      %p124 = por %p122, %p123
      %s125 = ssub.s32 %s23, %s30
      %p126 = scmp.eq.s32.totalorder %s125, 0
      %s128 = sadd.s32 %s127, 1
      %s129 = scalar_select %p126, %s127, %s128
      %p132 = pneg %p126
      %p133 = scmp.eq.s32.totalorder %s23, 1
      %p134 = por %p132, %p133
      %p135 = scmp.ne.s32.totalorder %s127, %s130
      %p136 = scmp.eq.s32.totalorder %s23, 0
      %p137 = por %p135, %p136
      %p138 = scmp.ne.s32.totalorder %s127, %s130
      %p139 = scmp.eq.s32.totalorder %s28, 1
      %p140 = por %p138, %p139
      %p141 = scmp.ne.s32.totalorder %s130, %s131
      %p142 = scmp.eq.s32.totalorder %s28, 0
      %p143 = por %p141, %p142
      %p144 = scmp.ne.s32.totalorder %s130, %s131
      %p145 = scmp.eq.s32.totalorder %s29, 1
      %p146 = por %p144, %p145
      %p148 = scmp.ne.s32.totalorder %s131, %s147
      %p149 = scmp.eq.s32.totalorder %s29, 0
      %p150 = por %p148, %p149
      %s151 = ssub.s32 %s23, %s30
      %p152 = scmp.eq.s32.totalorder %s151, 0
      %s154 = sadd.s32 %s153, 1
      %s155 = scalar_select %p152, %s153, %s154
      %p158 = pneg %p152
      %p159 = scmp.eq.s32.totalorder %s23, 1
      %p160 = por %p158, %p159
      %p161 = scmp.ne.s32.totalorder %s153, %s156
      %p162 = scmp.eq.s32.totalorder %s23, 0
      %p163 = por %p161, %p162
      %p164 = scmp.ne.s32.totalorder %s153, %s156
      %p165 = scmp.eq.s32.totalorder %s28, 1
      %p166 = por %p164, %p165
      %p167 = scmp.ne.s32.totalorder %s156, %s157
      %p168 = scmp.eq.s32.totalorder %s28, 0
      %p169 = por %p167, %p168
      %p170 = scmp.ne.s32.totalorder %s156, %s157
      %p171 = scmp.eq.s32.totalorder %s29, 1
      %p172 = por %p170, %p171
      %p174 = scmp.ne.s32.totalorder %s157, %s173
      %p175 = scmp.eq.s32.totalorder %s29, 0
      %p176 = por %p174, %p175
      %s177 = ssub.s32 %s23, %s30
      %p178 = scmp.eq.s32.totalorder %s177, 0
      %s180 = sadd.s32 %s179, 1
      %s181 = scalar_select %p178, %s179, %s180
      %p184 = pneg %p178
      %p185 = scmp.eq.s32.totalorder %s23, 1
      %p186 = por %p184, %p185
      %p187 = scmp.ne.s32.totalorder %s179, %s182
      %p188 = scmp.eq.s32.totalorder %s23, 0
      %p189 = por %p187, %p188
      %p190 = scmp.ne.s32.totalorder %s179, %s182
      %p191 = scmp.eq.s32.totalorder %s28, 1
      %p192 = por %p190, %p191
      %p193 = scmp.ne.s32.totalorder %s182, %s183
      %p194 = scmp.eq.s32.totalorder %s28, 0
      %p195 = por %p193, %p194
      %p196 = scmp.ne.s32.totalorder %s182, %s183
      %p197 = scmp.eq.s32.totalorder %s29, 1
      %p198 = por %p196, %p197
      %p200 = scmp.ne.s32.totalorder %s183, %s199
      %p201 = scmp.eq.s32.totalorder %s29, 0
      %p202 = por %p200, %p201
      %p203 = scmp.le.s32.totalorder 1, %s23
      %p204 = scmp.lt.s32.totalorder %s23, 3
      %p205 = pnand %p203, %p204
      %p206 = pneg %p205
      // Predicated region
      $region9: #{vib_forward.1} parent=5 // pred_check
        _
      $region10: #{vib_forward.1} parent=5 // pred_check_branch
        %208 = sbr.rel (%p205) target = $region12
      $region11: #{vib_forward.1} parent=5 // pred_region
        %s209 = ssub.s32 %s23, 1
        // Predicated region
        $region13: #{vib_forward.1} parent=11 // pred_check
          %p210 = pneg %p70
        $region14: #{vib_forward.1} parent=11 // pred_check_branch
          %212 = sbr.rel (%p210) target = $region16
        $region15: #{vib_forward.1} parent=11 // pred_region
          %s214 = ssub.s32 1024, 1024
          %215 = vsyncadd [#allocation6], %s214
          %s216 = sshll.u32 [#allocation5], 4
          %s217 = int_to_ptr.vmem [resolvable:$true] %s216
          %222 = dma.hbm_to_vmem [thread:$0]  %s1, 1024, %s217, [#allocation6], 256, 256, 16
        $region16: #{vib_forward.1} parent=11 // pred_fallthru
          _
        // Predicated region
        $region17: #{vib_forward.1} parent=11 // pred_check
          %p223 = pneg %p91
        $region18: #{vib_forward.1} parent=11 // pred_check_branch
          %225 = sbr.rel (%p223) target = $region20
        $region19: #{vib_forward.1} parent=11 // pred_region
          _
        $region20: #{vib_forward.1} parent=11 // pred_fallthru
          _
      $region12: #{vib_forward.1} parent=5 // pred_fallthru
        _
      %p226 = scmp.lt.s32.totalorder %s23, 2
      // Predicated region
      $region21: #{vib_forward.1} parent=5 // pred_check
        %p227 = pneg %p226
      $region22: #{vib_forward.1} parent=5 // pred_check_branch
        %229 = sbr.rel (%p227) target = $region24
      $region23: #{vib_forward.1} parent=5 // pred_region
        // Predicated region
        $region25: #{vib_forward.1} parent=23 // pred_check
          %p230 = pneg %p43
        $region26: #{vib_forward.1} parent=23 // pred_check_branch
          %232 = sbr.rel (%p230) target = $region28
        $region27: #{vib_forward.1} parent=23 // pred_region
          %s233 = sand.u32 %s23, 1
          %s234 = scalar_lea.sflag [#allocation3], %s233
          %s235 = sand.u32 %s33, 1
          %s236 = smul.addr %s235, 8
          %s237 = scalar_lea.vmem [#allocation2], %s236
          %s239 = ssub.s32 128, 128
          %240 = vsyncadd %s234, %s239
          %s241 = smul.addr %s23, 128
          %s242 = scalar_lea.hbm %s0, %s241
          %s244 = sshll.u32 %s237, 4
          %s245 = int_to_ptr.vmem [resolvable:$true] %s244
          %247 = dma.hbm_to_vmem [thread:$0]  %s242, 128, %s245, %s234
        $region28: #{vib_forward.1} parent=23 // pred_fallthru
          _
        // Predicated region
        $region29: #{vib_forward.1} parent=23 // pred_check
          %p248 = pneg %p111
        $region30: #{vib_forward.1} parent=23 // pred_check_branch
          %250 = sbr.rel (%p248) target = $region32
        $region31: #{vib_forward.1} parent=23 // pred_region
          %s251 = sand.u32 %s23, 1
          %s252 = scalar_lea.sflag [#allocation3], %s251
          %s253 = sand.u32 %s101, 1
          %s254 = smul.addr %s253, 8
          %s255 = scalar_lea.vmem [#allocation7], %s254
          %s257 = ssub.s32 128, 128
          %258 = vsyncadd %s252, %s257
          %s259 = smul.addr %s23, 128
          %s260 = scalar_lea.hbm %s3, %s259
          %s262 = sshll.u32 %s255, 4
          %s263 = int_to_ptr.vmem [resolvable:$true] %s262
          %265 = dma.hbm_to_vmem [thread:$0]  %s260, 128, %s263, %s252
        $region32: #{vib_forward.1} parent=23 // pred_fallthru
          _
      $region24: #{vib_forward.1} parent=5 // pred_fallthru
        _
      %p266 = scmp.le.s32.totalorder 1, %s23
      %p267 = scmp.lt.s32.totalorder %s23, 3
      %p268 = pnand %p266, %p267
      %p269 = pneg %p268
      // Predicated region
      $region33: #{vib_forward.1} parent=5 // pred_check
        _
      $region34: #{vib_forward.1} parent=5 // pred_check_branch
        %271 = sbr.rel (%p268) target = $region36
      $region35: #{vib_forward.1} parent=5 // pred_region
        %s272 = ssub.s32 %s23, 1
        %s273 = sand.u32 %s28, 1
        %s274 = scalar_lea.sflag [#allocation3], %s273
        %s275 = sand.u32 %s36, 1
        %s276 = smul.addr %s275, 8
        %s277 = scalar_lea.vmem [#allocation2], %s276
        // Predicated region
        $region37: #{vib_forward.1} parent=35 // pred_check
          %p278 = pneg %p49
        $region38: #{vib_forward.1} parent=35 // pred_check_branch
          %280 = sbr.rel (%p278) target = $region40
        $region39: #{vib_forward.1} parent=35 // pred_region
          %281 = dma.done %s274, 128
        $region40: #{vib_forward.1} parent=35 // pred_fallthru
          _
        // Predicated region
        $region41: #{vib_forward.1} parent=35 // pred_check
          %p282 = pneg %p70
        $region42: #{vib_forward.1} parent=35 // pred_check_branch
          %284 = sbr.rel (%p282) target = $region44
        $region43: #{vib_forward.1} parent=35 // pred_region
          %285 = dma.done [#allocation6], 1024
        $region44: #{vib_forward.1} parent=35 // pred_fallthru
          _
        %s286 = sand.u32 %s28, 1
        %s287 = scalar_lea.sflag [#allocation3], %s286
        %s288 = sand.u32 %s104, 1
        %s289 = smul.addr %s288, 8
        %s290 = scalar_lea.vmem [#allocation7], %s289
        // Predicated region
        $region45: #{vib_forward.1} parent=35 // pred_check
          %p291 = pneg %p117
        $region46: #{vib_forward.1} parent=35 // pred_check_branch
          %293 = sbr.rel (%p291) target = $region48
        $region47: #{vib_forward.1} parent=35 // pred_region
          %294 = dma.done %s287, 128
        $region48: #{vib_forward.1} parent=35 // pred_fallthru
          _
        %s295 = sand.u32 %s28, 1
        %s296 = scalar_lea.sflag [#allocation3], %s295
        %s297 = sand.u32 %s36, 1
        %s298 = smul.addr %s297, 8
        %s299 = scalar_lea.vmem [#allocation2], %s298
        %p300 = pneg %p49
        %p301 = pneg %p46
        %p302 = pneg %p70
        %p303 = pneg %p67
        %p304 = pneg %p91
        %p305 = pneg %p88
        %s306 = sand.u32 %s28, 1
        %s307 = scalar_lea.sflag [#allocation3], %s306
        %s308 = sand.u32 %s104, 1
        %s309 = smul.addr %s308, 8
        %s310 = scalar_lea.vmem [#allocation7], %s309
        %p311 = pneg %p117
        %p312 = pneg %p114
        %p313 = pneg %p143
        %p314 = pneg %p140
        %s315 = sand.u32 %s130, 1
        %s316 = scalar_lea.sflag [#allocation4], %s315
        %s317 = sand.u32 %s130, 1
        %s318 = smul.addr %s317, 8
        %s319 = scalar_lea.vmem [#allocation8], %s318
        %p320 = pneg %p169
        %p321 = pneg %p166
        %s322 = sand.u32 %s28, 1
        %s323 = scalar_lea.sflag [#allocation10], %s322
        %s324 = sand.u32 %s156, 1
        %s325 = smul.addr %s324, 8
        %s326 = scalar_lea.vmem [#allocation9], %s325
        %p327 = pneg %p195
        %p328 = pneg %p192
        %s329 = sand.u32 %s28, 1
        %s330 = scalar_lea.sflag [#allocation10], %s329
        %s331 = sand.u32 %s182, 1
        %s332 = smul.addr %s331, 8
        %s333 = scalar_lea.vmem [#allocation11], %s332
        %v334 = vld [vmem:[%s277] sm:$0xff]
        %v335 = vld [vmem:[#allocation5] sm:$0xff]
        %v336 = vld [vmem:[#allocation5 + $0x8] sm:$0xff]
        %v337 = vld [vmem:[#allocation5 + $0x10] sm:$0xff]
        %v338 = vld [vmem:[#allocation5 + $0x18] sm:$0xff]
        %v339 = vld [vmem:[#allocation5 + $0x20] sm:$0xff]
        %v340 = vld [vmem:[#allocation5 + $0x28] sm:$0xff]
        %v341 = vld [vmem:[#allocation5 + $0x30] sm:$0xff]
        %v342 = vld [vmem:[#allocation5 + $0x38] sm:$0xff]
        %v343 = vld [vmem:[%s2] sm:$0x3]
        %v345 = vlaneseq
        %v346 = vshrl.u32 %v345, 7
        %v347 = vsub.s32 0, %v346
        %v348 = vrot.slane %v343, %v347
        %v349 = vlaneseq
        %v350 = vshrl.u32 %v349, 7
        %v351 = vsub.s32 1, %v350
        %v352 = vrot.slane %v343, %v351
        %vm355 = vcmask 261120
        %v357 = vsel %vm355, %v334, 0
        %359 = vmatprep.subr.mxu0 %v336
        %360 = vmatpush1.msra.mxu0 %v335
        %361 = vmatprep.subr.mxu0 %v338
        %362 = vmatpush1.msra.mxu0 %v337
        %363 = vmatprep.subr.mxu0 %v340
        %364 = vmatpush1.msra.mxu0 %v339
        %365 = vmatprep.subr.mxu0 %v342
        %366 = vmatpush1.msra.mxu0 %v341
        %367 = vmatprep.subr.mxu0 0.0
        %368 = vmatpush1.msra.mxu0 0.0
        %369 = vmatprep.subr.mxu0 0.0
        %370 = vmatpush1.msra.mxu0 0.0
        %371 = vmatprep.subr.mxu0 0.0
        %372 = vmatpush1.msra.mxu0 0.0
        %373 = vmatprep.subr.mxu0 0.0
        %374 = vmatpush1.msra.mxu0 0.0
        %375 = vmatprep.subr.mxu0 0.0
        %376 = vmatpush1.msra.mxu0 0.0
        %377 = vmatprep.subr.mxu0 0.0
        %378 = vmatpush1.msra.mxu0 0.0
        %379 = vmatprep.subr.mxu0 0.0
        %380 = vmatpush1.msra.mxu0 0.0
        %381 = vmatprep.subr.mxu0 0.0
        %382 = vmatpush1.msra.mxu0 0.0
        %383 = vmatprep.subr.mxu0 0.0
        %384 = vmatpush1.msra.mxu0 0.0
        %385 = vmatprep.subr.mxu0 0.0
        %386 = vmatpush1.msra.mxu0 0.0
        %387 = vmatprep.subr.mxu0 0.0
        %388 = vmatpush1.msra.mxu0 0.0
        %389 = vmatprep.subr.mxu0 0.0
        %390 = vmatpush1.msra.mxu0 0.0
        %391 = vmatprep.subr.mxu0 0.0
        %392 = vmatpush1.msra.mxu0 0.0
        %393 = vmatprep.subr.mxu0 0.0
        %394 = vmatpush1.msra.mxu0 0.0
        %395 = vmatprep.subr.mxu0 0.0
        %396 = vmatpush1.msra.mxu0 0.0
        %397 = vmatprep.subr.mxu0 0.0
        %398 = vmatpush1.msra.mxu0 0.0
        %399 = vmatprep.subr.mxu0 0.0
        %400 = vmatpush1.msra.mxu0 0.0
        %401 = vmatprep.subr.mxu0 0.0
        %402 = vmatpush1.msra.mxu0 0.0
        %403 = vmatprep.subr.mxu0 0.0
        %404 = vmatpush1.msra.mxu0 0.0
        %405 = vmatprep.subr.mxu0 0.0
        %406 = vmatpush1.msra.mxu0 0.0
        %407 = vmatprep.subr.mxu0 0.0
        %408 = vmatpush1.msra.mxu0 0.0
        %409 = vmatprep.subr.mxu0 0.0
        %410 = vmatpush1.msra.mxu0 0.0
        %411 = vmatprep.subr.mxu0 0.0
        %412 = vmatpush1.msra.mxu0 0.0
        %413 = vmatprep.subr.mxu0 0.0
        %414 = vmatpush1.msra.mxu0 0.0
        %415 = vmatprep.subr.mxu0 0.0
        %416 = vmatpush1.msra.mxu0 0.0
        %417 = vmatprep.subr.mxu0 0.0
        %418 = vmatpush1.msra.mxu0 0.0
        %419 = vmatprep.subr.mxu0 0.0
        %420 = vmatpush1.msra.mxu0 0.0
        %421 = vmatprep.subr.mxu0 0.0
        %422 = vmatpush1.msra.mxu0 0.0
        %423 = vmatprep.mubr.f32.mxu0 0.0
        %424 = vmatmul.mubr.f32.gmra.mrb[0].mxu0 %v357
        %v425 = vpop.f32.mrb[0].mxu0
        %v426 = vadd.f32 %v348, %v425
        %v427 = vpop.f32.mrb[0].mxu0
        %v428 = vadd.f32 %v352, %v427
        %429 = vdwg.mxu0
        %v430 = vld [vmem:[%s290] sm:$0xff]
        %v431 = vmul.f32 %v428, 0.5
        %v432 = vmul.f32 %v431, 1.442695
        %v433 = vpow.pop %v432
        %v434 = vmul.f32 %v430, %v433
        %v435 = vadd.f32 %v426, %v434
        %vm436 = vcmask 130048
        %437 = vst.msk [vmem:[%s319] sm:$0xff] %vm436, %v435
        %438 = vst.msk [vmem:[%s326] sm:$0xff] %vm436, %v426
        %439 = vst.msk [vmem:[%s333] sm:$0xff] %vm436, %v428
        %s440 = sand.u32 %s130, 1
        %s441 = scalar_lea.sflag [#allocation4], %s440
        %s442 = sand.u32 %s130, 1
        %s443 = smul.addr %s442, 8
        %s444 = scalar_lea.vmem [#allocation8], %s443
        %s445 = sand.u32 %s28, 1
        %s446 = scalar_lea.sflag [#allocation10], %s445
        %s447 = sand.u32 %s156, 1
        %s448 = smul.addr %s447, 8
        %s449 = scalar_lea.vmem [#allocation9], %s448
        %s450 = sand.u32 %s28, 1
        %s451 = scalar_lea.sflag [#allocation10], %s450
        %s452 = sand.u32 %s182, 1
        %s453 = smul.addr %s452, 8
        %s454 = scalar_lea.vmem [#allocation11], %s453
        // Predicated region
        $region49: #{vib_forward.1} parent=35 // pred_check
          %p455 = pneg %p140
        $region50: #{vib_forward.1} parent=35 // pred_check_branch
          %457 = sbr.rel (%p455) target = $region52
        $region51: #{vib_forward.1} parent=35 // pred_region
          %s459 = ssub.s32 128, 128
          %460 = vsyncadd %s441, %s459
          %s461 = smul.addr %s28, 128
          %s462 = scalar_lea.hbm %s4, %s461
          %s464 = sshll.u32 %s444, 4
          %s465 = int_to_ptr.vmem [resolvable:$true] %s464
          %467 = dma.vmem_to_hbm [thread:$0]  %s465, 128, %s462, %s441
        $region52: #{vib_forward.1} parent=35 // pred_fallthru
          _
        // Predicated region
        $region53: #{vib_forward.1} parent=35 // pred_check
          %p468 = pneg %p166
        $region54: #{vib_forward.1} parent=35 // pred_check_branch
          %470 = sbr.rel (%p468) target = $region56
        $region55: #{vib_forward.1} parent=35 // pred_region
          %s472 = ssub.s32 128, 128
          %473 = vsyncadd %s446, %s472
          %s474 = smul.addr %s28, 128
          %s475 = scalar_lea.hbm %s5, %s474
          %s477 = sshll.u32 %s449, 4
          %s478 = int_to_ptr.vmem [resolvable:$true] %s477
          %480 = dma.vmem_to_hbm [thread:$0]  %s478, 128, %s475, %s446
        $region56: #{vib_forward.1} parent=35 // pred_fallthru
          _
        // Predicated region
        $region57: #{vib_forward.1} parent=35 // pred_check
          %p481 = pneg %p192
        $region58: #{vib_forward.1} parent=35 // pred_check_branch
          %483 = sbr.rel (%p481) target = $region60
        $region59: #{vib_forward.1} parent=35 // pred_region
          %s485 = ssub.s32 128, 128
          %486 = vsyncadd %s451, %s485
          %s487 = smul.addr %s28, 128
          %s488 = scalar_lea.hbm %s6, %s487
          %s490 = sshll.u32 %s454, 4
          %s491 = int_to_ptr.vmem [resolvable:$true] %s490
          %493 = dma.vmem_to_hbm [thread:$0]  %s491, 128, %s488, %s451
        $region60: #{vib_forward.1} parent=35 // pred_fallthru
          _
      $region36: #{vib_forward.1} parent=5 // pred_fallthru
        _
      %p494 = scmp.le.s32.totalorder 2, %s23
      // Predicated region
      $region61: #{vib_forward.1} parent=5 // pred_check
        %p495 = pneg %p494
      $region62: #{vib_forward.1} parent=5 // pred_check_branch
        %497 = sbr.rel (%p495) target = $region64
      $region63: #{vib_forward.1} parent=5 // pred_region
        %s498 = ssub.s32 %s23, 2
        // Predicated region
        $region65: #{vib_forward.1} parent=63 // pred_check
          %p499 = pneg %p146
        $region66: #{vib_forward.1} parent=63 // pred_check_branch
          %501 = sbr.rel (%p499) target = $region68
        $region67: #{vib_forward.1} parent=63 // pred_region
          %s502 = sand.u32 %s131, 1
          %s503 = scalar_lea.sflag [#allocation4], %s502
          %s504 = sand.u32 %s131, 1
          %s505 = smul.addr %s504, 8
          %s506 = scalar_lea.vmem [#allocation8], %s505
          %507 = dma.done %s503, 128
        $region68: #{vib_forward.1} parent=63 // pred_fallthru
          _
        // Predicated region
        $region69: #{vib_forward.1} parent=63 // pred_check
          %p508 = pneg %p172
        $region70: #{vib_forward.1} parent=63 // pred_check_branch
          %510 = sbr.rel (%p508) target = $region72
        $region71: #{vib_forward.1} parent=63 // pred_region
          %s511 = sand.u32 %s29, 1
          %s512 = scalar_lea.sflag [#allocation10], %s511
          %s513 = sand.u32 %s157, 1
          %s514 = smul.addr %s513, 8
          %s515 = scalar_lea.vmem [#allocation9], %s514
          %516 = dma.done %s512, 128
        $region72: #{vib_forward.1} parent=63 // pred_fallthru
          _
        // Predicated region
        $region73: #{vib_forward.1} parent=63 // pred_check
          %p517 = pneg %p198
        $region74: #{vib_forward.1} parent=63 // pred_check_branch
          %519 = sbr.rel (%p517) target = $region76
        $region75: #{vib_forward.1} parent=63 // pred_region
          %s520 = sand.u32 %s29, 1
          %s521 = scalar_lea.sflag [#allocation10], %s520
          %s522 = sand.u32 %s183, 1
          %s523 = smul.addr %s522, 8
          %s524 = scalar_lea.vmem [#allocation11], %s523
          %525 = dma.done %s521, 128
        $region76: #{vib_forward.1} parent=63 // pred_fallthru
          _
      $region64: #{vib_forward.1} parent=5 // pred_fallthru
        _
    $region6: #{vib_forward.1} parent=1 // loop_footer
      %s27 = sadd.s32 1, %s23
    $region7: #{vib_forward.1} parent=1 // loop_footer_branch
      %22 = sbr.rel target = $region3
    $region8: #{vib_forward.1} parent=1 // loop_exit
      _
    %526 = vsyncpa [#allocation3], 1
    %s527 = scalar_lea.sflag [#allocation3], 1
    %528 = vsyncpa %s527, 1
    %529 = vsyncpa [#allocation6], 1
    %530 = vsyncpa [#allocation4], 1
    %s531 = scalar_lea.sflag [#allocation4], 1
    %532 = vsyncpa %s531, 1
    %533 = vsyncpa [#allocation10], 1
    %s534 = scalar_lea.sflag [#allocation10], 1
    %535 = vsyncpa %s534, 1

</llo_original>
